<compile_context>
chip_gen: v5e
topology: v5e:2x2
jax: 0.10.0
libtpu: 0.0.40
codegen_flags: <defaults>
</compile_context>

<pallas_src>
import math
import functools

import jax
import jax.numpy as jnp
from jax import lax
from jax.experimental import pallas as pl
from jax.experimental.pallas import tpu as pltpu

# Older JAX releases exposed these under a different name; keep a cheap fallback.
_CompilerParams = getattr(pltpu, "CompilerParams", None) or getattr(
    pltpu, "TPUCompilerParams"
)


def _cdiv(a, b):
    return (a + b - 1) // b


def _round_up(v, k):
    return ((v + k - 1) // k) * k


# ----------------------------------------------------------------------------
# Fused kernel: grid = (M tiles, N tiles).  LayerNorm once per M tile (j == 0),
# bf16 MXU matmul + bias + LeakyReLU per (M, N) tile.
# ----------------------------------------------------------------------------
def _unit_kernel(x_ref, gamma_ref, beta_ref, w_ref, b_ref, o_ref, xn_ref, *,
                 eps, neg_slope):
    j = pl.program_id(1)

    @pl.when(j == 0)
    def _():
        x = x_ref[...].astype(jnp.float32)                    # (tm, F_in)
        mean = jnp.mean(x, axis=-1, keepdims=True)
        xc = x - mean
        var = jnp.mean(xc * xc, axis=-1, keepdims=True)
        inv = lax.rsqrt(var + jnp.float32(eps))               # EUP rsqrt
        xn = xc * inv * gamma_ref[...] + beta_ref[...]        # LN affine (f32)
        xn_ref[...] = xn.astype(xn_ref.dtype)                 # cache as bf16

    # (tm, K) bf16 @ (K, tn) bf16 -> f32 accumulation on the MXU.
    y = jnp.dot(xn_ref[...], w_ref[...],
                preferred_element_type=jnp.float32) + b_ref[...]
    o_ref[...] = jnp.where(y >= 0, y, jnp.float32(neg_slope) * y).astype(o_ref.dtype)


def _spec(block_shape, index_map, *, buffers=None):
    """BlockSpec helper: single-buffer resident operands when the API allows it."""
    if buffers is not None and hasattr(pl, "Buffered"):
        try:
            return pl.BlockSpec(block_shape, index_map,
                                pipeline_mode=pl.Buffered(buffers))
        except TypeError:  # pipeline_mode kwarg not supported on this JAX version
            pass
    return pl.BlockSpec(block_shape, index_map)


def unit_forward(params, x, *, eps=1e-5, neg_slope=0.01, tile_m=512, tile_n=512):
    """Fused LayerNorm -> Linear -> LeakyReLU.  x: [..., in_features]."""
    wT = params["wT"]
    if wT.dtype != jnp.bfloat16:
        wT = wT.astype(jnp.bfloat16)
    f_in, f_out_pad = wT.shape
    f_out = int(params.get("out_features", f_out_pad))

    lead = x.shape[:-1]
    xf = x.reshape(-1, f_in)                   # no pad / no dtype copy in the wrapper
    m = xf.shape[0]
    x_item = jnp.dtype(xf.dtype).itemsize
    o_item = jnp.dtype(x.dtype).itemsize

    # --- tile selection -------------------------------------------------------
    tm = min(tile_m, _round_up(m, 8))
    tm = max(8, (tm // 8) * 8)
    if _cdiv(m, tm) < 2 and m > 8:             # feed both TensorCores on v7x
        tm = max(8, _round_up(_cdiv(m, 2), 8))
    tn = min(tile_n, f_out_pad)                # f_out_pad is a multiple of 128

    def vmem_need(tm_, tn_):
        x_b = 2 * _round_up(tm_, 8) * _round_up(f_in, 128) * x_item
        w_b = 2 * _round_up(f_in, 8) * tn_ * 2            # bf16 weight tile
        o_b = 2 * _round_up(tm_, 8) * tn_ * o_item
        s_b = _round_up(tm_, 16) * _round_up(f_in, 128) * 2
        misc = 4 * 8 * _round_up(max(f_in, f_out_pad), 128) * 4
        return x_b + w_b + o_b + s_b + misc

    budget = 48 << 20                           # conservative: v7x has 64 MiB physical
    while vmem_need(tm, tn) > budget and tm > 128:
        tm = max(128, (tm // 2 // 8) * 8)
    while vmem_need(tm, tn) > budget and tn > 128:
        tn = max(128, (tn // 2 // 128) * 128)

    n_m = _cdiv(m, tm)
    n_n = _cdiv(f_out_pad, tn)
    vmem_limit = int(min(max(2 * vmem_need(tm, tn), 32 << 20), 128 << 20))

    gamma2d = params["gamma"].reshape(1, f_in).astype(jnp.float32)
    beta2d = params["beta"].reshape(1, f_in).astype(jnp.float32)
    b2d = params["b"].reshape(1, f_out_pad).astype(jnp.float32)

    # Weight / bias are fully resident when there is a single N tile.
    w_buffers = 1 if n_n == 1 else None
    kernel = functools.partial(_unit_kernel, eps=eps, neg_slope=neg_slope)

    def build(use_buffered):
        buf = (lambda b: b) if use_buffered else (lambda b: None)
        return pl.pallas_call(
            kernel,
            out_shape=jax.ShapeDtypeStruct((m, f_out_pad), x.dtype),
            grid=(n_m, n_n),
            in_specs=[
                pl.BlockSpec((tm, f_in), lambda i, j: (i, 0)),             # x row tile
                _spec((1, f_in), lambda i, j: (0, 0), buffers=buf(1)),     # gamma
                _spec((1, f_in), lambda i, j: (0, 0), buffers=buf(1)),     # beta
                _spec((f_in, tn), lambda i, j: (0, j), buffers=buf(w_buffers)),  # W (bf16)
                _spec((1, tn), lambda i, j: (0, j), buffers=buf(w_buffers)),     # bias
            ],
            out_specs=pl.BlockSpec((tm, tn), lambda i, j: (i, j)),
            scratch_shapes=[pltpu.VMEM((tm, f_in), jnp.bfloat16)],         # cached xn
            compiler_params=_CompilerParams(
                dimension_semantics=("parallel", "arbitrary"),
                vmem_limit_bytes=vmem_limit,
            ),
        )

    try:
        out = build(True)(xf, gamma2d, beta2d, wT, b2d)
    except Exception:  # fall back if Buffered(1) is unsupported on this JAX/libtpu
        out = build(False)(xf, gamma2d, beta2d, wT, b2d)

    if f_out != f_out_pad:
        out = out[:, :f_out]
    return out.reshape(*lead, f_out)


# ----------------------------------------------------------------------------
# Parameter init (PyTorch-equivalent defaults).  The Linear weight is stored
# pre-transposed [in, out], padded to a multiple of 128 on the out axis, bf16.
# ----------------------------------------------------------------------------
def init_params(key, in_features, out_features):
    kw, kb = jax.random.split(key)
    bound = 1.0 / math.sqrt(in_features)
    w = jax.random.uniform(kw, (out_features, in_features), jnp.float32, -bound, bound)
    b = jax.random.uniform(kb, (out_features,), jnp.float32, -bound, bound)

    f_out_pad = _round_up(out_features, 128)
    wT = jnp.zeros((in_features, f_out_pad), jnp.float32).at[:, :out_features].set(w.T)
    b_pad = jnp.zeros((f_out_pad,), jnp.float32).at[:out_features].set(b)
    return {
        "gamma": jnp.ones((in_features,), jnp.float32),   # LayerNorm weight
        "beta": jnp.zeros((in_features,), jnp.float32),   # LayerNorm bias
        "wT": wT.astype(jnp.bfloat16),                    # [in, f_out_pad] bf16
        "b": b_pad,                                       # [f_out_pad] f32
        "out_features": out_features,
    }


# ----------------------------------------------------------------------------
# Pure-JAX reference for validation (f32; matmul uses the same stored weights).
# ----------------------------------------------------------------------------
def reference_forward(params, x, *, eps=1e-5, neg_slope=0.01):
    f_out = int(params["out_features"])
    w = params["wT"].astype(jnp.float32)[:, :f_out]
    b = params["b"][:f_out]
    mean = jnp.mean(x, axis=-1, keepdims=True)
    var = jnp.mean((x - mean) ** 2, axis=-1, keepdims=True)
    xn = (x - mean) / jnp.sqrt(var + eps)
    xn = xn * params["gamma"] + params["beta"]
    y = xn @ w + b
    return jnp.where(y >= 0, y, neg_slope * y)


if __name__ == "__main__":
    in_features, out_features = 32, 64
    batch, seq = 2, 8

    key = jax.random.PRNGKey(0)
    k_x, k_p = jax.random.split(key)

    x = jax.random.normal(k_x, (batch, seq, in_features), jnp.float32)
    params = init_params(k_p, in_features, out_features)

    out = jax.block_until_ready(unit_forward(params, x))
    ref = reference_forward(params, x)

    assert out.shape == (batch, seq, out_features)
    max_err = float(jnp.max(jnp.abs(out - ref)))
    # bf16 MXU operands -> allow small deviation from the f32 reference.
    if max_err > 2e-2:
        raise RuntimeError(f"Pallas kernel mismatch vs reference: max_err={max_err}")
    print("KERNEL_OK")
</pallas_src>

<mosaic_0001>
module attributes {stable_mosaic.version = 11 : i64} {
  func.func @_unit_kernel(%arg0: i32, %arg1: i32, %arg2: memref<8x32xf32, #tpu.memory_space<vmem>>, %arg3: memref<1x32xf32, #tpu.memory_space<vmem>>, %arg4: memref<1x32xf32, #tpu.memory_space<vmem>>, %arg5: memref<32x128xbf16, #tpu.memory_space<vmem>>, %arg6: memref<1x128xf32, #tpu.memory_space<vmem>>, %arg7: memref<8x128xf32, #tpu.memory_space<vmem>>, %arg8: memref<8x32xbf16, #tpu.memory_space<vmem>>) attributes {dimension_semantics = [#tpu.dimension_semantics<parallel>, #tpu.dimension_semantics<arbitrary>], iteration_bounds = array<i64: 2, 1>, scalar_prefetch = 0 : i64, scratch_operands = 1 : i64, tpu.core_type = #tpu.core_type<tc>, window_params = [{transform_indices = @transform_0, window_bounds = array<i64: 8, 32>}, {pipeline_mode = #tpu.pipeline_mode<synchronous>, transform_indices = @transform_1, window_bounds = array<i64: 1, 32>}, {pipeline_mode = #tpu.pipeline_mode<synchronous>, transform_indices = @transform_2, window_bounds = array<i64: 1, 32>}, {pipeline_mode = #tpu.pipeline_mode<synchronous>, transform_indices = @transform_3, window_bounds = array<i64: 32, 128>}, {pipeline_mode = #tpu.pipeline_mode<synchronous>, transform_indices = @transform_4, window_bounds = array<i64: 1, 128>}, {transform_indices = @transform_5, window_bounds = array<i64: 8, 128>}]} {
    %c0_i32 = arith.constant 0 : i32
    %0 = arith.cmpi eq, %arg1, %c0_i32 : i32
    %1 = arith.extui %0 : i1 to i32
    %c0_i32_0 = arith.constant 0 : i32
    %2 = arith.cmpi ne, %1, %c0_i32_0 : i32
    scf.if %2 {
      %c0_10 = arith.constant 0 : index
      %c0_11 = arith.constant 0 : index
      %15 = vector.load %arg2[%c0_10, %c0_11] : memref<8x32xf32, #tpu.memory_space<vmem>>, vector<8x32xf32>
      %cst_12 = arith.constant dense<0.000000e+00> : vector<8xf32>
      %16 = vector.multi_reduction <add>, %15, %cst_12 [1] : vector<8x32xf32> to vector<8xf32>
      %17 = vector.shape_cast %16 : vector<8xf32> to vector<8x1xf32>
      %cst_13 = arith.constant 3.200000e+01 : f32
      %18 = vector.broadcast %cst_13 : f32 to vector<8x1xf32>
      %19 = arith.divf %17, %18 : vector<8x1xf32>
      %20 = vector.broadcast %19 : vector<8x1xf32> to vector<8x32xf32>
      %21 = arith.subf %15, %20 : vector<8x32xf32>
      %22 = arith.mulf %21, %21 : vector<8x32xf32>
      %cst_14 = arith.constant dense<0.000000e+00> : vector<8xf32>
      %23 = vector.multi_reduction <add>, %22, %cst_14 [1] : vector<8x32xf32> to vector<8xf32>
      %24 = vector.shape_cast %23 : vector<8xf32> to vector<8x1xf32>
      %cst_15 = arith.constant 3.200000e+01 : f32
      %25 = vector.broadcast %cst_15 : f32 to vector<8x1xf32>
      %26 = arith.divf %24, %25 : vector<8x1xf32>
      %cst_16 = arith.constant 9.99999974E-6 : f32
      %27 = vector.broadcast %cst_16 : f32 to vector<8x1xf32>
      %28 = arith.addf %26, %27 : vector<8x1xf32>
      %29 = math.rsqrt %28 : vector<8x1xf32>
      %30 = vector.broadcast %29 : vector<8x1xf32> to vector<8x32xf32>
      %31 = arith.mulf %21, %30 : vector<8x32xf32>
      %c0_17 = arith.constant 0 : index
      %c0_18 = arith.constant 0 : index
      %32 = vector.load %arg3[%c0_17, %c0_18] : memref<1x32xf32, #tpu.memory_space<vmem>>, vector<1x32xf32>
      %33 = vector.broadcast %32 : vector<1x32xf32> to vector<8x32xf32>
      %34 = arith.mulf %31, %33 : vector<8x32xf32>
      %c0_19 = arith.constant 0 : index
      %c0_20 = arith.constant 0 : index
      %35 = vector.load %arg4[%c0_19, %c0_20] : memref<1x32xf32, #tpu.memory_space<vmem>>, vector<1x32xf32>
      %36 = vector.broadcast %35 : vector<1x32xf32> to vector<8x32xf32>
      %37 = arith.addf %34, %36 : vector<8x32xf32>
      %38 = arith.truncf %37 : vector<8x32xf32> to vector<8x32xbf16>
      %c0_21 = arith.constant 0 : index
      %c0_22 = arith.constant 0 : index
      %39 = vector.load %arg8[%c0_21, %c0_22] : memref<8x32xbf16, #tpu.memory_space<vmem>>, vector<8x32xbf16>
      tpu.vector_store %arg8[%c0_21, %c0_22], %38 {strides = array<i32>} : memref<8x32xbf16, #tpu.memory_space<vmem>>, vector<8x32xbf16>,
    } else {
    }
    %c0 = arith.constant 0 : index
    %c0_1 = arith.constant 0 : index
    %3 = vector.load %arg8[%c0, %c0_1] : memref<8x32xbf16, #tpu.memory_space<vmem>>, vector<8x32xbf16>
    %c0_2 = arith.constant 0 : index
    %c0_3 = arith.constant 0 : index
    %4 = vector.load %arg5[%c0_2, %c0_3] : memref<32x128xbf16, #tpu.memory_space<vmem>>, vector<32x128xbf16>
    %cst = arith.constant dense<0.000000e+00> : vector<8x128xf32>
    %5 = tpu.matmul %3, %4, %cst {dimension_numbers = #tpu.dot_dimension_numbers<[1], [0], [0], [1], [0, 0, 1, 1], [], []>} : vector<8x32xbf16>, vector<32x128xbf16>, vector<8x128xf32> -> vector<8x128xf32>
    %c0_4 = arith.constant 0 : index
    %c0_5 = arith.constant 0 : index
    %6 = vector.load %arg6[%c0_4, %c0_5] : memref<1x128xf32, #tpu.memory_space<vmem>>, vector<1x128xf32>
    %7 = vector.broadcast %6 : vector<1x128xf32> to vector<8x128xf32>
    %8 = arith.addf %5, %7 : vector<8x128xf32>
    %cst_6 = arith.constant 0.000000e+00 : f32
    %9 = vector.broadcast %cst_6 : f32 to vector<8x128xf32>
    %10 = arith.cmpf oge, %8, %9 : vector<8x128xf32>
    %cst_7 = arith.constant 0.00999999977 : f32
    %11 = vector.broadcast %cst_7 : f32 to vector<8x128xf32>
    %12 = arith.mulf %11, %8 : vector<8x128xf32>
    %13 = arith.select %10, %8, %12 : vector<8x128xi1>, vector<8x128xf32>
    %c0_8 = arith.constant 0 : index
    %c0_9 = arith.constant 0 : index
    %14 = vector.load %arg7[%c0_8, %c0_9] : memref<8x128xf32, #tpu.memory_space<vmem>>, vector<8x128xf32>
    tpu.vector_store %arg7[%c0_8, %c0_9], %13 {strides = array<i32>} : memref<8x128xf32, #tpu.memory_space<vmem>>, vector<8x128xf32>,
    return
  }
  func.func @transform_0(%arg0: i32, %arg1: i32) -> (i32, i32) {
    %c0_i32 = arith.constant 0 : i32
    %c0_i32_0 = arith.constant 0 : i32
    return %arg0, %c0_i32 : i32, i32
  }
  func.func @transform_1(%arg0: i32, %arg1: i32) -> (i32, i32) {
    %c0_i32 = arith.constant 0 : i32
    %c0_i32_0 = arith.constant 0 : i32
    %c0_i32_1 = arith.constant 0 : i32
    return %c0_i32, %c0_i32_0 : i32, i32
  }
  func.func @transform_2(%arg0: i32, %arg1: i32) -> (i32, i32) {
    %c0_i32 = arith.constant 0 : i32
    %c0_i32_0 = arith.constant 0 : i32
    %c0_i32_1 = arith.constant 0 : i32
    return %c0_i32, %c0_i32_0 : i32, i32
  }
  func.func @transform_3(%arg0: i32, %arg1: i32) -> (i32, i32) {
    %c0_i32 = arith.constant 0 : i32
    %c0_i32_0 = arith.constant 0 : i32
    return %c0_i32, %arg1 : i32, i32
  }
  func.func @transform_4(%arg0: i32, %arg1: i32) -> (i32, i32) {
    %c0_i32 = arith.constant 0 : i32
    %c0_i32_0 = arith.constant 0 : i32
    return %c0_i32, %arg1 : i32, i32
  }
  func.func @transform_5(%arg0: i32, %arg1: i32) -> (i32, i32) {
    %c0_i32 = arith.constant 0 : i32
    return %arg0, %arg1 : i32, i32
  }
}

module attributes {stable_mosaic.version = 11 : i64} {
  func.func @_unit_kernel(%arg0: i32, %arg1: i32, %arg2: memref<8x32xf32, #tpu.memory_space<vmem>>, %arg3: memref<1x32xf32, #tpu.memory_space<vmem>>, %arg4: memref<1x32xf32, #tpu.memory_space<vmem>>, %arg5: memref<32x128xbf16, #tpu.memory_space<vmem>>, %arg6: memref<1x128xf32, #tpu.memory_space<vmem>>, %arg7: memref<8x128xf32, #tpu.memory_space<vmem>>, %arg8: memref<8x32xbf16, #tpu.memory_space<vmem>>) attributes {dimension_semantics = [#tpu.dimension_semantics<parallel>, #tpu.dimension_semantics<arbitrary>], iteration_bounds = array<i64: 2, 1>, scalar_prefetch = 0 : i64, scratch_operands = 1 : i64, tpu.core_type = #tpu.core_type<tc>, window_params = [{transform_indices = @transform_0, window_bounds = array<i64: 8, 32>}, {pipeline_mode = #tpu.pipeline_mode<synchronous>, transform_indices = @transform_1, window_bounds = array<i64: 1, 32>}, {pipeline_mode = #tpu.pipeline_mode<synchronous>, transform_indices = @transform_2, window_bounds = array<i64: 1, 32>}, {transform_indices = @transform_3, window_bounds = array<i64: 32, 128>}, {transform_indices = @transform_4, window_bounds = array<i64: 1, 128>}, {transform_indices = @transform_5, window_bounds = array<i64: 8, 128>}]} {
    %c0_i32 = arith.constant 0 : i32
    %0 = arith.cmpi eq, %arg1, %c0_i32 : i32
    %1 = arith.extui %0 : i1 to i32
    %c0_i32_0 = arith.constant 0 : i32
    %2 = arith.cmpi ne, %1, %c0_i32_0 : i32
    scf.if %2 {
      %c0_10 = arith.constant 0 : index
      %c0_11 = arith.constant 0 : index
      %15 = vector.load %arg2[%c0_10, %c0_11] : memref<8x32xf32, #tpu.memory_space<vmem>>, vector<8x32xf32>
      %cst_12 = arith.constant dense<0.000000e+00> : vector<8xf32>
      %16 = vector.multi_reduction <add>, %15, %cst_12 [1] : vector<8x32xf32> to vector<8xf32>
      %17 = vector.shape_cast %16 : vector<8xf32> to vector<8x1xf32>
      %cst_13 = arith.constant 3.200000e+01 : f32
      %18 = vector.broadcast %cst_13 : f32 to vector<8x1xf32>
      %19 = arith.divf %17, %18 : vector<8x1xf32>
      %20 = vector.broadcast %19 : vector<8x1xf32> to vector<8x32xf32>
      %21 = arith.subf %15, %20 : vector<8x32xf32>
      %22 = arith.mulf %21, %21 : vector<8x32xf32>
      %cst_14 = arith.constant dense<0.000000e+00> : vector<8xf32>
      %23 = vector.multi_reduction <add>, %22, %cst_14 [1] : vector<8x32xf32> to vector<8xf32>
      %24 = vector.shape_cast %23 : vector<8xf32> to vector<8x1xf32>
      %cst_15 = arith.constant 3.200000e+01 : f32
      %25 = vector.broadcast %cst_15 : f32 to vector<8x1xf32>
      %26 = arith.divf %24, %25 : vector<8x1xf32>
      %cst_16 = arith.constant 9.99999974E-6 : f32
      %27 = vector.broadcast %cst_16 : f32 to vector<8x1xf32>
      %28 = arith.addf %26, %27 : vector<8x1xf32>
      %29 = math.rsqrt %28 : vector<8x1xf32>
      %30 = vector.broadcast %29 : vector<8x1xf32> to vector<8x32xf32>
      %31 = arith.mulf %21, %30 : vector<8x32xf32>
      %c0_17 = arith.constant 0 : index
      %c0_18 = arith.constant 0 : index
      %32 = vector.load %arg3[%c0_17, %c0_18] : memref<1x32xf32, #tpu.memory_space<vmem>>, vector<1x32xf32>
      %33 = vector.broadcast %32 : vector<1x32xf32> to vector<8x32xf32>
      %34 = arith.mulf %31, %33 : vector<8x32xf32>
      %c0_19 = arith.constant 0 : index
      %c0_20 = arith.constant 0 : index
      %35 = vector.load %arg4[%c0_19, %c0_20] : memref<1x32xf32, #tpu.memory_space<vmem>>, vector<1x32xf32>
      %36 = vector.broadcast %35 : vector<1x32xf32> to vector<8x32xf32>
      %37 = arith.addf %34, %36 : vector<8x32xf32>
      %38 = arith.truncf %37 : vector<8x32xf32> to vector<8x32xbf16>
      %c0_21 = arith.constant 0 : index
      %c0_22 = arith.constant 0 : index
      %39 = vector.load %arg8[%c0_21, %c0_22] : memref<8x32xbf16, #tpu.memory_space<vmem>>, vector<8x32xbf16>
      tpu.vector_store %arg8[%c0_21, %c0_22], %38 {strides = array<i32>} : memref<8x32xbf16, #tpu.memory_space<vmem>>, vector<8x32xbf16>,
    } else {
    }
    %c0 = arith.constant 0 : index
    %c0_1 = arith.constant 0 : index
    %3 = vector.load %arg8[%c0, %c0_1] : memref<8x32xbf16, #tpu.memory_space<vmem>>, vector<8x32xbf16>
    %c0_2 = arith.constant 0 : index
    %c0_3 = arith.constant 0 : index
    %4 = vector.load %arg5[%c0_2, %c0_3] : memref<32x128xbf16, #tpu.memory_space<vmem>>, vector<32x128xbf16>
    %cst = arith.constant dense<0.000000e+00> : vector<8x128xf32>
    %5 = tpu.matmul %3, %4, %cst {dimension_numbers = #tpu.dot_dimension_numbers<[1], [0], [0], [1], [0, 0, 1, 1], [], []>} : vector<8x32xbf16>, vector<32x128xbf16>, vector<8x128xf32> -> vector<8x128xf32>
    %c0_4 = arith.constant 0 : index
    %c0_5 = arith.constant 0 : index
    %6 = vector.load %arg6[%c0_4, %c0_5] : memref<1x128xf32, #tpu.memory_space<vmem>>, vector<1x128xf32>
    %7 = vector.broadcast %6 : vector<1x128xf32> to vector<8x128xf32>
    %8 = arith.addf %5, %7 : vector<8x128xf32>
    %cst_6 = arith.constant 0.000000e+00 : f32
    %9 = vector.broadcast %cst_6 : f32 to vector<8x128xf32>
    %10 = arith.cmpf oge, %8, %9 : vector<8x128xf32>
    %cst_7 = arith.constant 0.00999999977 : f32
    %11 = vector.broadcast %cst_7 : f32 to vector<8x128xf32>
    %12 = arith.mulf %11, %8 : vector<8x128xf32>
    %13 = arith.select %10, %8, %12 : vector<8x128xi1>, vector<8x128xf32>
    %c0_8 = arith.constant 0 : index
    %c0_9 = arith.constant 0 : index
    %14 = vector.load %arg7[%c0_8, %c0_9] : memref<8x128xf32, #tpu.memory_space<vmem>>, vector<8x128xf32>
    tpu.vector_store %arg7[%c0_8, %c0_9], %13 {strides = array<i32>} : memref<8x128xf32, #tpu.memory_space<vmem>>, vector<8x128xf32>,
    return
  }
  func.func @transform_0(%arg0: i32, %arg1: i32) -> (i32, i32) {
    %c0_i32 = arith.constant 0 : i32
    %c0_i32_0 = arith.constant 0 : i32
    return %arg0, %c0_i32 : i32, i32
  }
  func.func @transform_1(%arg0: i32, %arg1: i32) -> (i32, i32) {
    %c0_i32 = arith.constant 0 : i32
    %c0_i32_0 = arith.constant 0 : i32
    %c0_i32_1 = arith.constant 0 : i32
    return %c0_i32, %c0_i32_0 : i32, i32
  }
  func.func @transform_2(%arg0: i32, %arg1: i32) -> (i32, i32) {
    %c0_i32 = arith.constant 0 : i32
    %c0_i32_0 = arith.constant 0 : i32
    %c0_i32_1 = arith.constant 0 : i32
    return %c0_i32, %c0_i32_0 : i32, i32
  }
  func.func @transform_3(%arg0: i32, %arg1: i32) -> (i32, i32) {
    %c0_i32 = arith.constant 0 : i32
    %c0_i32_0 = arith.constant 0 : i32
    return %c0_i32, %arg1 : i32, i32
  }
  func.func @transform_4(%arg0: i32, %arg1: i32) -> (i32, i32) {
    %c0_i32 = arith.constant 0 : i32
    %c0_i32_0 = arith.constant 0 : i32
    return %c0_i32, %arg1 : i32, i32
  }
  func.func @transform_5(%arg0: i32, %arg1: i32) -> (i32, i32) {
    %c0_i32 = arith.constant 0 : i32
    return %arg0, %arg1 : i32, i32
  }
}

</mosaic_0001>

<llo_original>
// kernel: tpu_custom_call.1
$region0: #{tpu_custom_call.1}
  #allocation0 [shape = 'u32[]', space=smem, size = 0x4, offset = 0x4, fixed_abs, tag = 'smem constant byte address 0x4 - core index']
  #allocation1 [shape = 'u32[72,128]{1,0:T(1,128)}', space=vmem, size = 0x9000, scoped, tag = 'internal scratch']
  #allocation2 [shape = 'bf16[8,32]{1,0:T(8,128)(2,1)}', space=vmem, size = 0x800, scoped, tag = 'scratch operand']
  %s0 = inlined_call_operand.hbm [shape: f32[16,32], index: 0, kind: input, shape index: {}]
  %s1 = inlined_call_operand.hbm [shape: f32[1,32], index: 1, kind: input, shape index: {}]
  %s2 = inlined_call_operand.vmem [shape: f32[1,32], index: 2, kind: input, shape index: {}]
  %s3 = inlined_call_operand.hbm [shape: bf16[32,128], index: 3, kind: input, shape index: {}]
  %s4 = inlined_call_operand.vmem [shape: f32[1,128], index: 4, kind: input, shape index: {}]
  %s5 = inlined_call_operand.hbm [shape: f32[16,128], index: 5, kind: output, shape index: {}]
  %s6 = sld [smem:[#allocation0]]
  $region69: #{tpu_custom_call.1} parent=0
    _
  %s8 = ssub.s32 1, %s6
  %s9 = scalar_select 0, %s8, %s6
  $region1: #{tpu_custom_call.1} parent=0
    #allocation3 [shape = 'u8[8192]{0}', space=vmem, size = 0x2000, scoped, tag = 'input window, operand 0']
    #allocation4 [shape = 's32[2]{0}', space=sflag, size = 0x8, scoped, tag = 'scoped memory for tpu_custom_call.1']
    #allocation5 [shape = 's32[2]{0}', space=sflag, size = 0x8, scoped, tag = 'scoped memory for tpu_custom_call.1']
    #allocation6 [shape = 'u8[512]{0}', space=vmem, size = 0x400, scoped, tag = 'input window, operand 1, single buffered']
    #allocation7 [shape = 's32[1]{0}', space=sflag, size = 0x4, scoped, tag = 'scoped memory for tpu_custom_call.1']
    #allocation8 [shape = 'u8[8192]{0}', space=vmem, size = 0x2000, scoped, tag = 'input window, operand 3, single buffered']
    #allocation9 [shape = 'u8[8192]{0}', space=vmem, size = 0x2000, scoped, tag = 'output window, operand 0']
    %10 = vsyncpa [#allocation4], 0
    %s11 = scalar_lea.sflag [#allocation4], 1
    %12 = vsyncpa %s11, 0
    %13 = vsyncpa [#allocation7], 0
    %14 = vsyncpa [#allocation5], 0
    %s15 = scalar_lea.sflag [#allocation5], 1
    %16 = vsyncpa %s15, 0
    loop: start=0, step=1, limit=4
    $region2: #{tpu_custom_call.1} parent=1 // loop_pre_header
      _
    $region3: #{tpu_custom_call.1} parent=1 // loop_header
      %s18 = sphi 0, %s22
      %p19 = scmp.ge.s32.totalorder %s18, 4
      %s25 = sphi 0, %s37
      %s26 = sphi 0, %s33
      %s27 = sphi 0, %s25
      %s28 = sphi 0, %s26
      %s29 = sphi 0, %s27
      %s30 = sphi 0, %s28
      %s40 = sphi 0, %s42
      %s43 = sphi 0, %s40
      %s44 = sphi 0, %s43
      %s60 = sphi 0, %s44
      %s64 = sphi 0, %s64
      %s66 = sphi 0, %s64
      %s67 = sphi 0, %s66
      %s81 = sphi 0, %s67
      %s85 = sphi 0, %s85
      %s87 = sphi 0, %s85
      %s88 = sphi 0, %s87
      %s102 = sphi 0, %s88
      %s108 = sphi 0, %s110
      %s111 = sphi 0, %s108
      %s112 = sphi 0, %s111
      %s128 = sphi 0, %s112
      %s134 = sphi 0, %s136
      %s137 = sphi 0, %s134
      %s138 = sphi 0, %s137
      %s154 = sphi 0, %s138
      %s162 = sphi 0, %s164
      %s165 = sphi 0, %s162
      %s166 = sphi 0, %s165
      %s182 = sphi 0, %s166
    $region4: #{tpu_custom_call.1} parent=1 // loop_header_branch
      %21 = sbr.rel (%p19) target = $region8
    $region5: #{tpu_custom_call.1} parent=1 // loop_body
      %s23 = ssub.s32 %s18, 1
      %s24 = ssub.s32 %s18, 2
      %s31 = sadd.s32 1, %s26
      %p32 = scmp.ge.s32.totalorder %s31, 1
      %s33 = scalar_select %p32, 0, %s31
      %s34 = sadd.s32 1, %s25
      %s35 = scalar_select %p32, %s34, %s25
      %p36 = scmp.ge.s32.totalorder %s35, 2
      %s37 = scalar_select %p36, 0, %s35
      %s38 = ssub.s32 %s25, %s37
      %p39 = scmp.eq.s32.totalorder %s38, 0
      %s41 = sadd.s32 %s40, 1
      %s42 = scalar_select %p39, %s40, %s41
      %p45 = pneg %p39
      %p46 = scmp.eq.s32.totalorder %s18, 1
      %p47 = por %p45, %p46
      %p48 = scmp.ne.s32.totalorder %s40, %s43
      %p49 = scmp.eq.s32.totalorder %s18, 0
      %p50 = por %p48, %p49
      %p51 = scmp.ne.s32.totalorder %s40, %s43
      %p52 = scmp.eq.s32.totalorder %s23, 1
      %p53 = por %p51, %p52
      %p54 = scmp.ne.s32.totalorder %s43, %s44
      %p55 = scmp.eq.s32.totalorder %s23, 0
      %p56 = por %p54, %p55
      %p57 = scmp.ne.s32.totalorder %s43, %s44
      %p58 = scmp.eq.s32.totalorder %s24, 1
      %p59 = por %p57, %p58
      %p61 = scmp.ne.s32.totalorder %s44, %s60
      %p62 = scmp.eq.s32.totalorder %s24, 0
      %p63 = por %p61, %p62
      %s65 = sadd.s32 %s64, 1
      %p68 = scmp.eq.s32.totalorder %s18, 1
      %p69 = scmp.ne.s32.totalorder %s64, %s66
      %p70 = scmp.eq.s32.totalorder %s18, 0
      %p71 = por %p69, %p70
      %p72 = scmp.ne.s32.totalorder %s64, %s66
      %p73 = scmp.eq.s32.totalorder %s23, 1
      %p74 = por %p72, %p73
      %p75 = scmp.ne.s32.totalorder %s66, %s67
      %p76 = scmp.eq.s32.totalorder %s23, 0
      %p77 = por %p75, %p76
      %p78 = scmp.ne.s32.totalorder %s66, %s67
      %p79 = scmp.eq.s32.totalorder %s24, 1
      %p80 = por %p78, %p79
      %p82 = scmp.ne.s32.totalorder %s67, %s81
      %p83 = scmp.eq.s32.totalorder %s24, 0
      %p84 = por %p82, %p83
      %s86 = sadd.s32 %s85, 1
      %p89 = scmp.eq.s32.totalorder %s18, 1
      %p90 = scmp.ne.s32.totalorder %s85, %s87
      %p91 = scmp.eq.s32.totalorder %s18, 0
      %p92 = por %p90, %p91
      %p93 = scmp.ne.s32.totalorder %s85, %s87
      %p94 = scmp.eq.s32.totalorder %s23, 1
      %p95 = por %p93, %p94
      %p96 = scmp.ne.s32.totalorder %s87, %s88
      %p97 = scmp.eq.s32.totalorder %s23, 0
      %p98 = por %p96, %p97
      %p99 = scmp.ne.s32.totalorder %s87, %s88
      %p100 = scmp.eq.s32.totalorder %s24, 1
      %p101 = por %p99, %p100
      %p103 = scmp.ne.s32.totalorder %s88, %s102
      %p104 = scmp.eq.s32.totalorder %s24, 0
      %p105 = por %p103, %p104
      %s106 = ssub.s32 %s26, %s33
      %p107 = scmp.eq.s32.totalorder %s106, 0
      %s109 = sadd.s32 %s108, 1
      %s110 = scalar_select %p107, %s108, %s109
      %p113 = pneg %p107
      %p114 = scmp.eq.s32.totalorder %s18, 1
      %p115 = por %p113, %p114
      %p116 = scmp.ne.s32.totalorder %s108, %s111
      %p117 = scmp.eq.s32.totalorder %s18, 0
      %p118 = por %p116, %p117
      %p119 = scmp.ne.s32.totalorder %s108, %s111
      %p120 = scmp.eq.s32.totalorder %s23, 1
      %p121 = por %p119, %p120
      %p122 = scmp.ne.s32.totalorder %s111, %s112
      %p123 = scmp.eq.s32.totalorder %s23, 0
      %p124 = por %p122, %p123
      %p125 = scmp.ne.s32.totalorder %s111, %s112
      %p126 = scmp.eq.s32.totalorder %s24, 1
      %p127 = por %p125, %p126
      %p129 = scmp.ne.s32.totalorder %s112, %s128
      %p130 = scmp.eq.s32.totalorder %s24, 0
      %p131 = por %p129, %p130
      %s132 = ssub.s32 %s26, %s33
      %p133 = scmp.eq.s32.totalorder %s132, 0
      %s135 = sadd.s32 %s134, 1
      %s136 = scalar_select %p133, %s134, %s135
      %p139 = pneg %p133
      %p140 = scmp.eq.s32.totalorder %s18, 1
      %p141 = por %p139, %p140
      %p142 = scmp.ne.s32.totalorder %s134, %s137
      %p143 = scmp.eq.s32.totalorder %s18, 0
      %p144 = por %p142, %p143
      %p145 = scmp.ne.s32.totalorder %s134, %s137
      %p146 = scmp.eq.s32.totalorder %s23, 1
      %p147 = por %p145, %p146
      %p148 = scmp.ne.s32.totalorder %s137, %s138
      %p149 = scmp.eq.s32.totalorder %s23, 0
      %p150 = por %p148, %p149
      %p151 = scmp.ne.s32.totalorder %s137, %s138
      %p152 = scmp.eq.s32.totalorder %s24, 1
      %p153 = por %p151, %p152
      %p155 = scmp.ne.s32.totalorder %s138, %s154
      %p156 = scmp.eq.s32.totalorder %s24, 0
      %p157 = por %p155, %p156
      %s158 = ssub.s32 %s25, %s37
      %s159 = ssub.s32 %s26, %s33
      %s160 = sor.u32 %s158, %s159
      %p161 = scmp.eq.s32.totalorder %s160, 0
      %s163 = sadd.s32 %s162, 1
      %s164 = scalar_select %p161, %s162, %s163
      %p167 = pneg %p161
      %p168 = scmp.eq.s32.totalorder %s18, 1
      %p169 = por %p167, %p168
      %p170 = scmp.ne.s32.totalorder %s162, %s165
      %p171 = scmp.eq.s32.totalorder %s18, 0
      %p172 = por %p170, %p171
      %p173 = scmp.ne.s32.totalorder %s162, %s165
      %p174 = scmp.eq.s32.totalorder %s23, 1
      %p175 = por %p173, %p174
      %p176 = scmp.ne.s32.totalorder %s165, %s166
      %p177 = scmp.eq.s32.totalorder %s23, 0
      %p178 = por %p176, %p177
      %p179 = scmp.ne.s32.totalorder %s165, %s166
      %p180 = scmp.eq.s32.totalorder %s24, 1
      %p181 = por %p179, %p180
      %p183 = scmp.ne.s32.totalorder %s166, %s182
      %p184 = scmp.eq.s32.totalorder %s24, 0
      %p185 = por %p183, %p184
      %p186 = scmp.le.s32.totalorder 1, %s18
      %p187 = scmp.lt.s32.totalorder %s18, 3
      %p188 = pnand %p186, %p187
      %p189 = pneg %p188
      // Predicated region
      $region9: #{tpu_custom_call.1} parent=5 // pred_check
        _
      $region10: #{tpu_custom_call.1} parent=5 // pred_check_branch
        %191 = sbr.rel (%p188) target = $region12
      $region11: #{tpu_custom_call.1} parent=5 // pred_region
        %s192 = ssub.s32 %s18, 1
        // Predicated region
        $region13: #{tpu_custom_call.1} parent=11 // pred_check
          %p193 = pneg %p77
        $region14: #{tpu_custom_call.1} parent=11 // pred_check_branch
          %195 = sbr.rel (%p193) target = $region16
        $region15: #{tpu_custom_call.1} parent=11 // pred_region
          %197 = vsyncadd [#allocation7], 0
          %s199 = sshll.u32 %s1, 4
          %s200 = int_to_ptr.hbm [resolvable:$true] %s199
          %s201 = sshll.u32 [#allocation6], 4
          %s202 = int_to_ptr.vmem [resolvable:$true] %s201
          %204 = dma.hbm_to_vmem [thread:$0]  %s200, 16, %s202, [#allocation7]
        $region16: #{tpu_custom_call.1} parent=11 // pred_fallthru
          _
        // Predicated region
        $region17: #{tpu_custom_call.1} parent=11 // pred_check
          %p205 = pneg %p98
        $region18: #{tpu_custom_call.1} parent=11 // pred_check_branch
          %207 = sbr.rel (%p205) target = $region20
        $region19: #{tpu_custom_call.1} parent=11 // pred_region
          _
        $region20: #{tpu_custom_call.1} parent=11 // pred_fallthru
          _
        // Predicated region
        $region21: #{tpu_custom_call.1} parent=11 // pred_check
          %p208 = pneg %p124
        $region22: #{tpu_custom_call.1} parent=11 // pred_check_branch
          %210 = sbr.rel (%p208) target = $region24
        $region23: #{tpu_custom_call.1} parent=11 // pred_region
          %212 = vsyncadd [#allocation7], 0
          %s213 = smul.addr %s28, 4
          %s214 = scalar_lea.hbm %s3, %s213
          %s215 = sshll.u32 %s214, 4
          %s216 = int_to_ptr.hbm [resolvable:$true] %s215
          %s217 = sshll.u32 [#allocation8], 4
          %s218 = int_to_ptr.vmem [resolvable:$true] %s217
          %223 = dma.hbm_to_vmem [thread:$0]  %s216, 256, %s218, [#allocation7], 64, 64, 4
        $region24: #{tpu_custom_call.1} parent=11 // pred_fallthru
          _
        // Predicated region
        $region25: #{tpu_custom_call.1} parent=11 // pred_check
          %p224 = pneg %p150
        $region26: #{tpu_custom_call.1} parent=11 // pred_check_branch
          %226 = sbr.rel (%p224) target = $region28
        $region27: #{tpu_custom_call.1} parent=11 // pred_region
          %p227 = scmp.lt.s32.totalorder %s28, 0
          %s228 = scalar_select %p227, %s28, 0
          %s229 = scalar_lea.vmem %s4, %s228
        $region28: #{tpu_custom_call.1} parent=11 // pred_fallthru
          _
      $region12: #{tpu_custom_call.1} parent=5 // pred_fallthru
        _
      %p230 = scmp.lt.s32.totalorder %s18, 2
      // Predicated region
      $region29: #{tpu_custom_call.1} parent=5 // pred_check
        %p231 = pneg %p230
      $region30: #{tpu_custom_call.1} parent=5 // pred_check_branch
        %233 = sbr.rel (%p231) target = $region32
      $region31: #{tpu_custom_call.1} parent=5 // pred_region
        // Predicated region
        $region33: #{tpu_custom_call.1} parent=31 // pred_check
          %p234 = pneg %p50
        $region34: #{tpu_custom_call.1} parent=31 // pred_check_branch
          %236 = sbr.rel (%p234) target = $region36
        $region35: #{tpu_custom_call.1} parent=31 // pred_region
          %s237 = sand.u32 %s40, 1
          %s238 = scalar_lea.sflag [#allocation4], %s237
          %s239 = sand.u32 %s40, 1
          %s240 = smul.addr %s239, 8
          %s241 = scalar_lea.vmem [#allocation3], %s240
          %243 = vsyncadd %s238, 0
          %s244 = smul.addr %s25, 8
          %s245 = scalar_lea.hbm %s0, %s244
          %s247 = sshll.u32 %s245, 4
          %s248 = int_to_ptr.hbm [resolvable:$true] %s247
          %s249 = sshll.u32 %s241, 4
          %s250 = int_to_ptr.vmem [resolvable:$true] %s249
          %252 = dma.hbm_to_vmem [thread:$0]  %s248, 128, %s250, %s238
        $region36: #{tpu_custom_call.1} parent=31 // pred_fallthru
          _
      $region32: #{tpu_custom_call.1} parent=5 // pred_fallthru
        _
      %p253 = scmp.le.s32.totalorder 1, %s18
      %p254 = scmp.lt.s32.totalorder %s18, 3
      %p255 = pnand %p253, %p254
      %p256 = pneg %p255
      // Predicated region
      $region37: #{tpu_custom_call.1} parent=5 // pred_check
        _
      $region38: #{tpu_custom_call.1} parent=5 // pred_check_branch
        %258 = sbr.rel (%p255) target = $region40
      $region39: #{tpu_custom_call.1} parent=5 // pred_region
        %s259 = ssub.s32 %s18, 1
        %s260 = sand.u32 %s43, 1
        %s261 = scalar_lea.sflag [#allocation4], %s260
        %s262 = sand.u32 %s43, 1
        %s263 = smul.addr %s262, 8
        %s264 = scalar_lea.vmem [#allocation3], %s263
        // Predicated region
        $region41: #{tpu_custom_call.1} parent=39 // pred_check
          %p265 = pneg %p56
        $region42: #{tpu_custom_call.1} parent=39 // pred_check_branch
          %267 = sbr.rel (%p265) target = $region44
        $region43: #{tpu_custom_call.1} parent=39 // pred_region
          %269 = dma.done %s261, 128
        $region44: #{tpu_custom_call.1} parent=39 // pred_fallthru
          _
        // Predicated region
        $region45: #{tpu_custom_call.1} parent=39 // pred_check
          %p270 = pneg %p77
        $region46: #{tpu_custom_call.1} parent=39 // pred_check_branch
          %272 = sbr.rel (%p270) target = $region48
        $region47: #{tpu_custom_call.1} parent=39 // pred_region
          %274 = dma.done [#allocation7], 16
        $region48: #{tpu_custom_call.1} parent=39 // pred_fallthru
          _
        // Predicated region
        $region49: #{tpu_custom_call.1} parent=39 // pred_check
          %p275 = pneg %p124
        $region50: #{tpu_custom_call.1} parent=39 // pred_check_branch
          %277 = sbr.rel (%p275) target = $region52
        $region51: #{tpu_custom_call.1} parent=39 // pred_region
          %279 = dma.done [#allocation7], 256
        $region52: #{tpu_custom_call.1} parent=39 // pred_fallthru
          _
        %s280 = sand.u32 %s43, 1
        %s281 = scalar_lea.sflag [#allocation4], %s280
        %s282 = sand.u32 %s43, 1
        %s283 = smul.addr %s282, 8
        %s284 = scalar_lea.vmem [#allocation3], %s283
        %p285 = pneg %p56
        %p286 = pneg %p53
        %p287 = pneg %p77
        %p288 = pneg %p74
        %p289 = pneg %p98
        %p290 = pneg %p95
        %p291 = pneg %p124
        %p292 = pneg %p121
        %p293 = scmp.lt.s32.totalorder %s28, 0
        %s294 = scalar_select %p293, %s28, 0
        %s295 = scalar_lea.vmem %s4, %s294
        %p296 = pneg %p150
        %p297 = pneg %p147
        %p298 = pneg %p178
        %p299 = pneg %p175
        %s300 = sand.u32 %s165, 1
        %s301 = scalar_lea.sflag [#allocation5], %s300
        %s302 = sand.u32 %s165, 1
        %s303 = smul.addr %s302, 8
        %s304 = scalar_lea.vmem [#allocation9], %s303
        %p305 = scmp.lt.s32.totalorder %s28, 0
        %s306 = scalar_select %p305, %s28, 0
        %s307 = scalar_lea.vmem %s4, %s306
        %p309 = scmp.eq.s32.totalorder %s28, 0
        // Predicated region
        $region53: #{tpu_custom_call.1} parent=39 // pred_check
          %p310 = pneg %p309
        $region54: #{tpu_custom_call.1} parent=39 // pred_check_branch
          %312 = sbr.rel (%p310) target = $region56
        $region55: #{tpu_custom_call.1} parent=39 // pred_region
          %v313 = vld [vmem:[%s264] sm:$0xff]
          %vm314 = vcmask 261120
          %v315 = vsel %vm314, %v313, 0.0
          %316 = vadd.xlane.f32.xlu0 %v315
          %v317 = vpop.xlane.xlu0 %316
          %v318 = vrcp.pop 32.0
          %v319 = vmul.f32 32.0, %v318
          %v320 = vsub.f32 1.0, %v319
          %v321 = vmul.f32 %v318, %v320
          %v322 = vadd.f32 %v318, %v321
          %vm323 = vweird.f32 %v318
          %v324 = vsel %vm323, %v318, %v322
          %v325 = vmul.f32 %v317, %v324
          %v326 = vsub.f32 %v313, %v325
          %v327 = vmul.f32 %v326, %v326
          %v328 = vsel %vm314, %v327, 0.0
          %329 = vadd.xlane.f32.xlu0 %v328
          %v330 = vpop.xlane.xlu0 %329
          %v331 = vmul.f32 %v330, %v324
          %v332 = vadd.f32 %v331, 1e-05
          %v333 = vrsqrt.pop %v332
          %v334 = vmul.f32 %v333, %v332
          %v335 = vmul.f32 %v334, %v333
          %v336 = vmul.f32 0.5, %v335
          %v337 = vsub.f32 1.5, %v336
          %v338 = vmul.f32 %v333, %v337
          %vm339 = vweird.f32 %v332
          %vm340 = vweird.f32 %v333
          %vm341 = vmor %vm339, %vm340
          %v342 = vsel %vm341, %v333, %v338
          %v343 = vmul.f32 %v326, %v342
          %v344 = vld [vmem:[#allocation6] sm:$0x1]
          %v346 = vperm.slane %v344, 0
          %v348 = vmul.f32 %v343, %v346
          %v349 = vld [vmem:[%s2] sm:$0x1]
          %v351 = vperm.slane %v349, 0
          %v353 = vadd.f32 %v348, %v351
          %v354 = vpack.c.bf16 %v353, %v353
          %vm355 = vcmask 257024
          %356 = vst.msk [vmem:[#allocation2] sm:$0xf] %vm355, %v354
        $region56: #{tpu_custom_call.1} parent=39 // pred_fallthru
          _
        %v357 = vld [vmem:[#allocation2] sm:$0xf]
        %v358 = vld [vmem:[#allocation8] sm:$0xf]
        %v359 = vld [vmem:[#allocation8 + $0x4] sm:$0xf]
        %v360 = vld [vmem:[#allocation8 + $0x8] sm:$0xf]
        %v361 = vld [vmem:[#allocation8 + $0xc] sm:$0xf]
        %v362 = vld [vmem:[%s307] sm:$0x1]
        %v364 = vperm.slane %v362, 0
        %v370 = vunpack.c.l.b16 %v358
        %v371 = vunpack.c.l.b16 %v359
        %v372 = vunpack.c.l.b16 %v360
        %v373 = vunpack.c.l.b16 %v361
        %v374 = vpack.c.b16 %v371, %v370
        %v375 = vpack.c.b16 %v373, %v372
        %vm378 = vcmask 261120
        %v380 = vsel %vm378, %v357, 0
        %382 = vmatpush.bf16.msra.mxu0 0
        %383 = vmatpush.bf16.msra.mxu0 0
        %384 = vmatpush.bf16.msra.mxu0 0
        %385 = vmatpush.bf16.msra.mxu0 0
        %386 = vmatpush.bf16.msra.mxu0 0
        %387 = vmatpush.bf16.msra.mxu0 0
        %388 = vmatpush.bf16.msra.mxu0 %v375
        %389 = vmatpush.bf16.msra.mxu0 %v374
        %390 = vmatmul.bf16.gmra.mxu0 %v380
        %v391 = vpop.f32.mrf.mxu0
        %v392 = vadd.f32 %v364, %v391
        %v393 = vpop.f32.mrf.mxu0
        %394 = vdwg.mxu0
        %vm395 = vcmp.ge.f32.partialorder %v392, 0.0
        %v396 = vmul.f32 %v392, 0.01
        %v397 = vsel %vm395, %v392, %v396
        %398 = vst [vmem:[%s304] sm:$0xff] %v397
        %s399 = sand.u32 %s165, 1
        %s400 = scalar_lea.sflag [#allocation5], %s399
        %s401 = sand.u32 %s165, 1
        %s402 = smul.addr %s401, 8
        %s403 = scalar_lea.vmem [#allocation9], %s402
        // Predicated region
        $region57: #{tpu_custom_call.1} parent=39 // pred_check
          %p404 = pneg %p175
        $region58: #{tpu_custom_call.1} parent=39 // pred_check_branch
          %406 = sbr.rel (%p404) target = $region60
        $region59: #{tpu_custom_call.1} parent=39 // pred_region
          %408 = vsyncadd %s400, 0
          %s409 = sadd.s32 %s28, %s27
          %s410 = smul.addr %s409, 8
          %s411 = scalar_lea.hbm %s5, %s410
          %s413 = sshll.u32 %s403, 4
          %s414 = int_to_ptr.vmem [resolvable:$true] %s413
          %s415 = sshll.u32 %s411, 4
          %s416 = int_to_ptr.hbm [resolvable:$true] %s415
          %418 = dma.vmem_to_hbm [thread:$0]  %s414, 128, %s416, %s400
        $region60: #{tpu_custom_call.1} parent=39 // pred_fallthru
          _
      $region40: #{tpu_custom_call.1} parent=5 // pred_fallthru
        _
      %p419 = scmp.le.s32.totalorder 2, %s18
      // Predicated region
      $region61: #{tpu_custom_call.1} parent=5 // pred_check
        %p420 = pneg %p419
      $region62: #{tpu_custom_call.1} parent=5 // pred_check_branch
        %422 = sbr.rel (%p420) target = $region64
      $region63: #{tpu_custom_call.1} parent=5 // pred_region
        %s423 = ssub.s32 %s18, 2
        // Predicated region
        $region65: #{tpu_custom_call.1} parent=63 // pred_check
          %p424 = pneg %p181
        $region66: #{tpu_custom_call.1} parent=63 // pred_check_branch
          %426 = sbr.rel (%p424) target = $region68
        $region67: #{tpu_custom_call.1} parent=63 // pred_region
          %s427 = sand.u32 %s166, 1
          %s428 = scalar_lea.sflag [#allocation5], %s427
          %s429 = sand.u32 %s166, 1
          %s430 = smul.addr %s429, 8
          %s431 = scalar_lea.vmem [#allocation9], %s430
          %433 = dma.done %s428, 128
        $region68: #{tpu_custom_call.1} parent=63 // pred_fallthru
          _
      $region64: #{tpu_custom_call.1} parent=5 // pred_fallthru
        _
    $region6: #{tpu_custom_call.1} parent=1 // loop_footer
      %s22 = sadd.s32 1, %s18
    $region7: #{tpu_custom_call.1} parent=1 // loop_footer_branch
      %17 = sbr.rel target = $region3
    $region8: #{tpu_custom_call.1} parent=1 // loop_exit
      _
    %434 = vsyncpa [#allocation4], 1
    %s435 = scalar_lea.sflag [#allocation4], 1
    %436 = vsyncpa %s435, 1
    %437 = vsyncpa [#allocation7], 1
    %438 = vsyncpa [#allocation5], 1
    %s439 = scalar_lea.sflag [#allocation5], 1
    %440 = vsyncpa %s439, 1

// kernel: tpu_custom_call.1
$region0: #{tpu_custom_call.1}
  #allocation0 [shape = 'u32[]', space=smem, size = 0x4, offset = 0x4, fixed_abs, tag = 'smem constant byte address 0x4 - core index']
  #allocation1 [shape = 'u32[72,128]{1,0:T(1,128)}', space=vmem, size = 0x9000, scoped, tag = 'internal scratch']
  #allocation2 [shape = 'bf16[8,32]{1,0:T(8,128)(2,1)}', space=vmem, size = 0x800, scoped, tag = 'scratch operand']
  %s0 = inlined_call_operand.hbm [shape: f32[16,32], index: 0, kind: input, shape index: {}]
  %s1 = inlined_call_operand.hbm [shape: f32[1,32], index: 1, kind: input, shape index: {}]
  %s2 = inlined_call_operand.vmem [shape: f32[1,32], index: 2, kind: input, shape index: {}]
  %s3 = inlined_call_operand.hbm [shape: bf16[32,128], index: 3, kind: input, shape index: {}]
  %s4 = inlined_call_operand.vmem [shape: f32[1,128], index: 4, kind: input, shape index: {}]
  %s5 = inlined_call_operand.hbm [shape: f32[16,128], index: 5, kind: output, shape index: {}]
  %s6 = sld [smem:[#allocation0]]
  $region69: #{tpu_custom_call.1} parent=0
    _
  %s8 = ssub.s32 1, %s6
  %s9 = scalar_select 0, %s8, %s6
  $region1: #{tpu_custom_call.1} parent=0
    #allocation3 [shape = 'u8[8192]{0}', space=vmem, size = 0x2000, scoped, tag = 'input window, operand 0']
    #allocation4 [shape = 's32[2]{0}', space=sflag, size = 0x8, scoped, tag = 'scoped memory for tpu_custom_call.1']
    #allocation5 [shape = 's32[2]{0}', space=sflag, size = 0x8, scoped, tag = 'scoped memory for tpu_custom_call.1']
    #allocation6 [shape = 'u8[512]{0}', space=vmem, size = 0x400, scoped, tag = 'input window, operand 1, single buffered']
    #allocation7 [shape = 's32[1]{0}', space=sflag, size = 0x4, scoped, tag = 'scoped memory for tpu_custom_call.1']
    #allocation8 [shape = 'u8[8192]{0}', space=vmem, size = 0x2000, scoped, tag = 'input window, operand 3, single buffered']
    #allocation9 [shape = 'u8[8192]{0}', space=vmem, size = 0x2000, scoped, tag = 'output window, operand 0']
    %10 = vsyncpa [#allocation4], 0
    %s11 = scalar_lea.sflag [#allocation4], 1
    %12 = vsyncpa %s11, 0
    %13 = vsyncpa [#allocation7], 0
    %14 = vsyncpa [#allocation5], 0
    %s15 = scalar_lea.sflag [#allocation5], 1
    %16 = vsyncpa %s15, 0
    loop: start=0, step=1, limit=4
    $region2: #{tpu_custom_call.1} parent=1 // loop_pre_header
      _
    $region3: #{tpu_custom_call.1} parent=1 // loop_header
      %s18 = sphi 0, %s22
      %p19 = scmp.ge.s32.totalorder %s18, 4
      %s25 = sphi 0, %s37
      %s26 = sphi 0, %s33
      %s27 = sphi 0, %s25
      %s28 = sphi 0, %s26
      %s29 = sphi 0, %s27
      %s30 = sphi 0, %s28
      %s40 = sphi 0, %s42
      %s43 = sphi 0, %s40
      %s44 = sphi 0, %s43
      %s60 = sphi 0, %s44
      %s64 = sphi 0, %s64
      %s66 = sphi 0, %s64
      %s67 = sphi 0, %s66
      %s81 = sphi 0, %s67
      %s85 = sphi 0, %s85
      %s87 = sphi 0, %s85
      %s88 = sphi 0, %s87
      %s102 = sphi 0, %s88
      %s108 = sphi 0, %s110
      %s111 = sphi 0, %s108
      %s112 = sphi 0, %s111
      %s128 = sphi 0, %s112
      %s134 = sphi 0, %s136
      %s137 = sphi 0, %s134
      %s138 = sphi 0, %s137
      %s154 = sphi 0, %s138
      %s162 = sphi 0, %s164
      %s165 = sphi 0, %s162
      %s166 = sphi 0, %s165
      %s182 = sphi 0, %s166
    $region4: #{tpu_custom_call.1} parent=1 // loop_header_branch
      %21 = sbr.rel (%p19) target = $region8
    $region5: #{tpu_custom_call.1} parent=1 // loop_body
      %s23 = ssub.s32 %s18, 1
      %s24 = ssub.s32 %s18, 2
      %s31 = sadd.s32 1, %s26
      %p32 = scmp.ge.s32.totalorder %s31, 1
      %s33 = scalar_select %p32, 0, %s31
      %s34 = sadd.s32 1, %s25
      %s35 = scalar_select %p32, %s34, %s25
      %p36 = scmp.ge.s32.totalorder %s35, 2
      %s37 = scalar_select %p36, 0, %s35
      %s38 = ssub.s32 %s25, %s37
      %p39 = scmp.eq.s32.totalorder %s38, 0
      %s41 = sadd.s32 %s40, 1
      %s42 = scalar_select %p39, %s40, %s41
      %p45 = pneg %p39
      %p46 = scmp.eq.s32.totalorder %s18, 1
      %p47 = por %p45, %p46
      %p48 = scmp.ne.s32.totalorder %s40, %s43
      %p49 = scmp.eq.s32.totalorder %s18, 0
      %p50 = por %p48, %p49
      %p51 = scmp.ne.s32.totalorder %s40, %s43
      %p52 = scmp.eq.s32.totalorder %s23, 1
      %p53 = por %p51, %p52
      %p54 = scmp.ne.s32.totalorder %s43, %s44
      %p55 = scmp.eq.s32.totalorder %s23, 0
      %p56 = por %p54, %p55
      %p57 = scmp.ne.s32.totalorder %s43, %s44
      %p58 = scmp.eq.s32.totalorder %s24, 1
      %p59 = por %p57, %p58
      %p61 = scmp.ne.s32.totalorder %s44, %s60
      %p62 = scmp.eq.s32.totalorder %s24, 0
      %p63 = por %p61, %p62
      %s65 = sadd.s32 %s64, 1
      %p68 = scmp.eq.s32.totalorder %s18, 1
      %p69 = scmp.ne.s32.totalorder %s64, %s66
      %p70 = scmp.eq.s32.totalorder %s18, 0
      %p71 = por %p69, %p70
      %p72 = scmp.ne.s32.totalorder %s64, %s66
      %p73 = scmp.eq.s32.totalorder %s23, 1
      %p74 = por %p72, %p73
      %p75 = scmp.ne.s32.totalorder %s66, %s67
      %p76 = scmp.eq.s32.totalorder %s23, 0
      %p77 = por %p75, %p76
      %p78 = scmp.ne.s32.totalorder %s66, %s67
      %p79 = scmp.eq.s32.totalorder %s24, 1
      %p80 = por %p78, %p79
      %p82 = scmp.ne.s32.totalorder %s67, %s81
      %p83 = scmp.eq.s32.totalorder %s24, 0
      %p84 = por %p82, %p83
      %s86 = sadd.s32 %s85, 1
      %p89 = scmp.eq.s32.totalorder %s18, 1
      %p90 = scmp.ne.s32.totalorder %s85, %s87
      %p91 = scmp.eq.s32.totalorder %s18, 0
      %p92 = por %p90, %p91
      %p93 = scmp.ne.s32.totalorder %s85, %s87
      %p94 = scmp.eq.s32.totalorder %s23, 1
      %p95 = por %p93, %p94
      %p96 = scmp.ne.s32.totalorder %s87, %s88
      %p97 = scmp.eq.s32.totalorder %s23, 0
      %p98 = por %p96, %p97
      %p99 = scmp.ne.s32.totalorder %s87, %s88
      %p100 = scmp.eq.s32.totalorder %s24, 1
      %p101 = por %p99, %p100
      %p103 = scmp.ne.s32.totalorder %s88, %s102
      %p104 = scmp.eq.s32.totalorder %s24, 0
      %p105 = por %p103, %p104
      %s106 = ssub.s32 %s26, %s33
      %p107 = scmp.eq.s32.totalorder %s106, 0
      %s109 = sadd.s32 %s108, 1
      %s110 = scalar_select %p107, %s108, %s109
      %p113 = pneg %p107
      %p114 = scmp.eq.s32.totalorder %s18, 1
      %p115 = por %p113, %p114
      %p116 = scmp.ne.s32.totalorder %s108, %s111
      %p117 = scmp.eq.s32.totalorder %s18, 0
      %p118 = por %p116, %p117
      %p119 = scmp.ne.s32.totalorder %s108, %s111
      %p120 = scmp.eq.s32.totalorder %s23, 1
      %p121 = por %p119, %p120
      %p122 = scmp.ne.s32.totalorder %s111, %s112
      %p123 = scmp.eq.s32.totalorder %s23, 0
      %p124 = por %p122, %p123
      %p125 = scmp.ne.s32.totalorder %s111, %s112
      %p126 = scmp.eq.s32.totalorder %s24, 1
      %p127 = por %p125, %p126
      %p129 = scmp.ne.s32.totalorder %s112, %s128
      %p130 = scmp.eq.s32.totalorder %s24, 0
      %p131 = por %p129, %p130
      %s132 = ssub.s32 %s26, %s33
      %p133 = scmp.eq.s32.totalorder %s132, 0
      %s135 = sadd.s32 %s134, 1
      %s136 = scalar_select %p133, %s134, %s135
      %p139 = pneg %p133
      %p140 = scmp.eq.s32.totalorder %s18, 1
      %p141 = por %p139, %p140
      %p142 = scmp.ne.s32.totalorder %s134, %s137
      %p143 = scmp.eq.s32.totalorder %s18, 0
      %p144 = por %p142, %p143
      %p145 = scmp.ne.s32.totalorder %s134, %s137
      %p146 = scmp.eq.s32.totalorder %s23, 1
      %p147 = por %p145, %p146
      %p148 = scmp.ne.s32.totalorder %s137, %s138
      %p149 = scmp.eq.s32.totalorder %s23, 0
      %p150 = por %p148, %p149
      %p151 = scmp.ne.s32.totalorder %s137, %s138
      %p152 = scmp.eq.s32.totalorder %s24, 1
      %p153 = por %p151, %p152
      %p155 = scmp.ne.s32.totalorder %s138, %s154
      %p156 = scmp.eq.s32.totalorder %s24, 0
      %p157 = por %p155, %p156
      %s158 = ssub.s32 %s25, %s37
      %s159 = ssub.s32 %s26, %s33
      %s160 = sor.u32 %s158, %s159
      %p161 = scmp.eq.s32.totalorder %s160, 0
      %s163 = sadd.s32 %s162, 1
      %s164 = scalar_select %p161, %s162, %s163
      %p167 = pneg %p161
      %p168 = scmp.eq.s32.totalorder %s18, 1
      %p169 = por %p167, %p168
      %p170 = scmp.ne.s32.totalorder %s162, %s165
      %p171 = scmp.eq.s32.totalorder %s18, 0
      %p172 = por %p170, %p171
      %p173 = scmp.ne.s32.totalorder %s162, %s165
      %p174 = scmp.eq.s32.totalorder %s23, 1
      %p175 = por %p173, %p174
      %p176 = scmp.ne.s32.totalorder %s165, %s166
      %p177 = scmp.eq.s32.totalorder %s23, 0
      %p178 = por %p176, %p177
      %p179 = scmp.ne.s32.totalorder %s165, %s166
      %p180 = scmp.eq.s32.totalorder %s24, 1
      %p181 = por %p179, %p180
      %p183 = scmp.ne.s32.totalorder %s166, %s182
      %p184 = scmp.eq.s32.totalorder %s24, 0
      %p185 = por %p183, %p184
      %p186 = scmp.le.s32.totalorder 1, %s18
      %p187 = scmp.lt.s32.totalorder %s18, 3
      %p188 = pnand %p186, %p187
      %p189 = pneg %p188
      // Predicated region
      $region9: #{tpu_custom_call.1} parent=5 // pred_check
        _
      $region10: #{tpu_custom_call.1} parent=5 // pred_check_branch
        %191 = sbr.rel (%p188) target = $region12
      $region11: #{tpu_custom_call.1} parent=5 // pred_region
        %s192 = ssub.s32 %s18, 1
        // Predicated region
        $region13: #{tpu_custom_call.1} parent=11 // pred_check
          %p193 = pneg %p77
        $region14: #{tpu_custom_call.1} parent=11 // pred_check_branch
          %195 = sbr.rel (%p193) target = $region16
        $region15: #{tpu_custom_call.1} parent=11 // pred_region
          %197 = vsyncadd [#allocation7], 0
          %s199 = sshll.u32 %s1, 4
          %s200 = int_to_ptr.hbm [resolvable:$true] %s199
          %s201 = sshll.u32 [#allocation6], 4
          %s202 = int_to_ptr.vmem [resolvable:$true] %s201
          %204 = dma.hbm_to_vmem [thread:$0]  %s200, 16, %s202, [#allocation7]
        $region16: #{tpu_custom_call.1} parent=11 // pred_fallthru
          _
        // Predicated region
        $region17: #{tpu_custom_call.1} parent=11 // pred_check
          %p205 = pneg %p98
        $region18: #{tpu_custom_call.1} parent=11 // pred_check_branch
          %207 = sbr.rel (%p205) target = $region20
        $region19: #{tpu_custom_call.1} parent=11 // pred_region
          _
        $region20: #{tpu_custom_call.1} parent=11 // pred_fallthru
          _
        // Predicated region
        $region21: #{tpu_custom_call.1} parent=11 // pred_check
          %p208 = pneg %p124
        $region22: #{tpu_custom_call.1} parent=11 // pred_check_branch
          %210 = sbr.rel (%p208) target = $region24
        $region23: #{tpu_custom_call.1} parent=11 // pred_region
          %212 = vsyncadd [#allocation7], 0
          %s213 = smul.addr %s28, 4
          %s214 = scalar_lea.hbm %s3, %s213
          %s215 = sshll.u32 %s214, 4
          %s216 = int_to_ptr.hbm [resolvable:$true] %s215
          %s217 = sshll.u32 [#allocation8], 4
          %s218 = int_to_ptr.vmem [resolvable:$true] %s217
          %223 = dma.hbm_to_vmem [thread:$0]  %s216, 256, %s218, [#allocation7], 64, 64, 4
        $region24: #{tpu_custom_call.1} parent=11 // pred_fallthru
          _
        // Predicated region
        $region25: #{tpu_custom_call.1} parent=11 // pred_check
          %p224 = pneg %p150
        $region26: #{tpu_custom_call.1} parent=11 // pred_check_branch
          %226 = sbr.rel (%p224) target = $region28
        $region27: #{tpu_custom_call.1} parent=11 // pred_region
          %p227 = scmp.lt.s32.totalorder %s28, 0
          %s228 = scalar_select %p227, %s28, 0
          %s229 = scalar_lea.vmem %s4, %s228
        $region28: #{tpu_custom_call.1} parent=11 // pred_fallthru
          _
      $region12: #{tpu_custom_call.1} parent=5 // pred_fallthru
        _
      %p230 = scmp.lt.s32.totalorder %s18, 2
      // Predicated region
      $region29: #{tpu_custom_call.1} parent=5 // pred_check
        %p231 = pneg %p230
      $region30: #{tpu_custom_call.1} parent=5 // pred_check_branch
        %233 = sbr.rel (%p231) target = $region32
      $region31: #{tpu_custom_call.1} parent=5 // pred_region
        // Predicated region
        $region33: #{tpu_custom_call.1} parent=31 // pred_check
          %p234 = pneg %p50
        $region34: #{tpu_custom_call.1} parent=31 // pred_check_branch
          %236 = sbr.rel (%p234) target = $region36
        $region35: #{tpu_custom_call.1} parent=31 // pred_region
          %s237 = sand.u32 %s40, 1
          %s238 = scalar_lea.sflag [#allocation4], %s237
          %s239 = sand.u32 %s40, 1
          %s240 = smul.addr %s239, 8
          %s241 = scalar_lea.vmem [#allocation3], %s240
          %243 = vsyncadd %s238, 0
          %s244 = smul.addr %s25, 8
          %s245 = scalar_lea.hbm %s0, %s244
          %s247 = sshll.u32 %s245, 4
          %s248 = int_to_ptr.hbm [resolvable:$true] %s247
          %s249 = sshll.u32 %s241, 4
          %s250 = int_to_ptr.vmem [resolvable:$true] %s249
          %252 = dma.hbm_to_vmem [thread:$0]  %s248, 128, %s250, %s238
        $region36: #{tpu_custom_call.1} parent=31 // pred_fallthru
          _
      $region32: #{tpu_custom_call.1} parent=5 // pred_fallthru
        _
      %p253 = scmp.le.s32.totalorder 1, %s18
      %p254 = scmp.lt.s32.totalorder %s18, 3
      %p255 = pnand %p253, %p254
      %p256 = pneg %p255
      // Predicated region
      $region37: #{tpu_custom_call.1} parent=5 // pred_check
        _
      $region38: #{tpu_custom_call.1} parent=5 // pred_check_branch
        %258 = sbr.rel (%p255) target = $region40
      $region39: #{tpu_custom_call.1} parent=5 // pred_region
        %s259 = ssub.s32 %s18, 1
        %s260 = sand.u32 %s43, 1
        %s261 = scalar_lea.sflag [#allocation4], %s260
        %s262 = sand.u32 %s43, 1
        %s263 = smul.addr %s262, 8
        %s264 = scalar_lea.vmem [#allocation3], %s263
        // Predicated region
        $region41: #{tpu_custom_call.1} parent=39 // pred_check
          %p265 = pneg %p56
        $region42: #{tpu_custom_call.1} parent=39 // pred_check_branch
          %267 = sbr.rel (%p265) target = $region44
        $region43: #{tpu_custom_call.1} parent=39 // pred_region
          %269 = dma.done %s261, 128
        $region44: #{tpu_custom_call.1} parent=39 // pred_fallthru
          _
        // Predicated region
        $region45: #{tpu_custom_call.1} parent=39 // pred_check
          %p270 = pneg %p77
        $region46: #{tpu_custom_call.1} parent=39 // pred_check_branch
          %272 = sbr.rel (%p270) target = $region48
        $region47: #{tpu_custom_call.1} parent=39 // pred_region
          %274 = dma.done [#allocation7], 16
        $region48: #{tpu_custom_call.1} parent=39 // pred_fallthru
          _
        // Predicated region
        $region49: #{tpu_custom_call.1} parent=39 // pred_check
          %p275 = pneg %p124
        $region50: #{tpu_custom_call.1} parent=39 // pred_check_branch
          %277 = sbr.rel (%p275) target = $region52
        $region51: #{tpu_custom_call.1} parent=39 // pred_region
          %279 = dma.done [#allocation7], 256
        $region52: #{tpu_custom_call.1} parent=39 // pred_fallthru
          _
        %s280 = sand.u32 %s43, 1
        %s281 = scalar_lea.sflag [#allocation4], %s280
        %s282 = sand.u32 %s43, 1
        %s283 = smul.addr %s282, 8
        %s284 = scalar_lea.vmem [#allocation3], %s283
        %p285 = pneg %p56
        %p286 = pneg %p53
        %p287 = pneg %p77
        %p288 = pneg %p74
        %p289 = pneg %p98
        %p290 = pneg %p95
        %p291 = pneg %p124
        %p292 = pneg %p121
        %p293 = scmp.lt.s32.totalorder %s28, 0
        %s294 = scalar_select %p293, %s28, 0
        %s295 = scalar_lea.vmem %s4, %s294
        %p296 = pneg %p150
        %p297 = pneg %p147
        %p298 = pneg %p178
        %p299 = pneg %p175
        %s300 = sand.u32 %s165, 1
        %s301 = scalar_lea.sflag [#allocation5], %s300
        %s302 = sand.u32 %s165, 1
        %s303 = smul.addr %s302, 8
        %s304 = scalar_lea.vmem [#allocation9], %s303
        %p305 = scmp.lt.s32.totalorder %s28, 0
        %s306 = scalar_select %p305, %s28, 0
        %s307 = scalar_lea.vmem %s4, %s306
        %p309 = scmp.eq.s32.totalorder %s28, 0
        // Predicated region
        $region53: #{tpu_custom_call.1} parent=39 // pred_check
          %p310 = pneg %p309
        $region54: #{tpu_custom_call.1} parent=39 // pred_check_branch
          %312 = sbr.rel (%p310) target = $region56
        $region55: #{tpu_custom_call.1} parent=39 // pred_region
          %v313 = vld [vmem:[%s264] sm:$0xff]
          %vm314 = vcmask 261120
          %v315 = vsel %vm314, %v313, 0.0
          %316 = vadd.xlane.f32.xlu0 %v315
          %v317 = vpop.xlane.xlu0 %316
          %v318 = vrcp.pop 32.0
          %v319 = vmul.f32 32.0, %v318
          %v320 = vsub.f32 1.0, %v319
          %v321 = vmul.f32 %v318, %v320
          %v322 = vadd.f32 %v318, %v321
          %vm323 = vweird.f32 %v318
          %v324 = vsel %vm323, %v318, %v322
          %v325 = vmul.f32 %v317, %v324
          %v326 = vsub.f32 %v313, %v325
          %v327 = vmul.f32 %v326, %v326
          %v328 = vsel %vm314, %v327, 0.0
          %329 = vadd.xlane.f32.xlu0 %v328
          %v330 = vpop.xlane.xlu0 %329
          %v331 = vmul.f32 %v330, %v324
          %v332 = vadd.f32 %v331, 1e-05
          %v333 = vrsqrt.pop %v332
          %v334 = vmul.f32 %v333, %v332
          %v335 = vmul.f32 %v334, %v333
          %v336 = vmul.f32 0.5, %v335
          %v337 = vsub.f32 1.5, %v336
          %v338 = vmul.f32 %v333, %v337
          %vm339 = vweird.f32 %v332
          %vm340 = vweird.f32 %v333
          %vm341 = vmor %vm339, %vm340
          %v342 = vsel %vm341, %v333, %v338
          %v343 = vmul.f32 %v326, %v342
          %v344 = vld [vmem:[#allocation6] sm:$0x1]
          %v346 = vperm.slane %v344, 0
          %v348 = vmul.f32 %v343, %v346
          %v349 = vld [vmem:[%s2] sm:$0x1]
          %v351 = vperm.slane %v349, 0
          %v353 = vadd.f32 %v348, %v351
          %v354 = vpack.c.bf16 %v353, %v353
          %vm355 = vcmask 257024
          %356 = vst.msk [vmem:[#allocation2] sm:$0xf] %vm355, %v354
        $region56: #{tpu_custom_call.1} parent=39 // pred_fallthru
          _
        %v357 = vld [vmem:[#allocation2] sm:$0xf]
        %v358 = vld [vmem:[#allocation8] sm:$0xf]
        %v359 = vld [vmem:[#allocation8 + $0x4] sm:$0xf]
        %v360 = vld [vmem:[#allocation8 + $0x8] sm:$0xf]
        %v361 = vld [vmem:[#allocation8 + $0xc] sm:$0xf]
        %v362 = vld [vmem:[%s307] sm:$0x1]
        %v364 = vperm.slane %v362, 0
        %v370 = vunpack.c.l.b16 %v358
        %v371 = vunpack.c.l.b16 %v359
        %v372 = vunpack.c.l.b16 %v360
        %v373 = vunpack.c.l.b16 %v361
        %v374 = vpack.c.b16 %v371, %v370
        %v375 = vpack.c.b16 %v373, %v372
        %vm378 = vcmask 261120
        %v380 = vsel %vm378, %v357, 0
        %382 = vmatpush.bf16.msra.mxu0 0
        %383 = vmatpush.bf16.msra.mxu0 0
        %384 = vmatpush.bf16.msra.mxu0 0
        %385 = vmatpush.bf16.msra.mxu0 0
        %386 = vmatpush.bf16.msra.mxu0 0
        %387 = vmatpush.bf16.msra.mxu0 0
        %388 = vmatpush.bf16.msra.mxu0 %v375
        %389 = vmatpush.bf16.msra.mxu0 %v374
        %390 = vmatmul.bf16.gmra.mxu0 %v380
        %v391 = vpop.f32.mrf.mxu0
        %v392 = vadd.f32 %v364, %v391
        %v393 = vpop.f32.mrf.mxu0
        %394 = vdwg.mxu0
        %vm395 = vcmp.ge.f32.partialorder %v392, 0.0
        %v396 = vmul.f32 %v392, 0.01
        %v397 = vsel %vm395, %v392, %v396
        %398 = vst [vmem:[%s304] sm:$0xff] %v397
        %s399 = sand.u32 %s165, 1
        %s400 = scalar_lea.sflag [#allocation5], %s399
        %s401 = sand.u32 %s165, 1
        %s402 = smul.addr %s401, 8
        %s403 = scalar_lea.vmem [#allocation9], %s402
        // Predicated region
        $region57: #{tpu_custom_call.1} parent=39 // pred_check
          %p404 = pneg %p175
        $region58: #{tpu_custom_call.1} parent=39 // pred_check_branch
          %406 = sbr.rel (%p404) target = $region60
        $region59: #{tpu_custom_call.1} parent=39 // pred_region
          %408 = vsyncadd %s400, 0
          %s409 = sadd.s32 %s28, %s27
          %s410 = smul.addr %s409, 8
          %s411 = scalar_lea.hbm %s5, %s410
          %s413 = sshll.u32 %s403, 4
          %s414 = int_to_ptr.vmem [resolvable:$true] %s413
          %s415 = sshll.u32 %s411, 4
          %s416 = int_to_ptr.hbm [resolvable:$true] %s415
          %418 = dma.vmem_to_hbm [thread:$0]  %s414, 128, %s416, %s400
        $region60: #{tpu_custom_call.1} parent=39 // pred_fallthru
          _
      $region40: #{tpu_custom_call.1} parent=5 // pred_fallthru
        _
      %p419 = scmp.le.s32.totalorder 2, %s18
      // Predicated region
      $region61: #{tpu_custom_call.1} parent=5 // pred_check
        %p420 = pneg %p419
      $region62: #{tpu_custom_call.1} parent=5 // pred_check_branch
        %422 = sbr.rel (%p420) target = $region64
      $region63: #{tpu_custom_call.1} parent=5 // pred_region
        %s423 = ssub.s32 %s18, 2
        // Predicated region
        $region65: #{tpu_custom_call.1} parent=63 // pred_check
          %p424 = pneg %p181
        $region66: #{tpu_custom_call.1} parent=63 // pred_check_branch
          %426 = sbr.rel (%p424) target = $region68
        $region67: #{tpu_custom_call.1} parent=63 // pred_region
          %s427 = sand.u32 %s166, 1
          %s428 = scalar_lea.sflag [#allocation5], %s427
          %s429 = sand.u32 %s166, 1
          %s430 = smul.addr %s429, 8
          %s431 = scalar_lea.vmem [#allocation9], %s430
          %433 = dma.done %s428, 128
        $region68: #{tpu_custom_call.1} parent=63 // pred_fallthru
          _
      $region64: #{tpu_custom_call.1} parent=5 // pred_fallthru
        _
    $region6: #{tpu_custom_call.1} parent=1 // loop_footer
      %s22 = sadd.s32 1, %s18
    $region7: #{tpu_custom_call.1} parent=1 // loop_footer_branch
      %17 = sbr.rel target = $region3
    $region8: #{tpu_custom_call.1} parent=1 // loop_exit
      _
    %434 = vsyncpa [#allocation4], 1
    %s435 = scalar_lea.sflag [#allocation4], 1
    %436 = vsyncpa %s435, 1
    %437 = vsyncpa [#allocation7], 1
    %438 = vsyncpa [#allocation5], 1
    %s439 = scalar_lea.sflag [#allocation5], 1
    %440 = vsyncpa %s439, 1

</llo_original>
